<compile_context>
chip_gen: v6e
topology: v6e:2x2x1
jax: 0.10.0
libtpu: 0.0.40
codegen_flags: <defaults>
</compile_context>

<pallas_src>
import jax
import jax.numpy as jnp
from jax.experimental import pallas as pl
from jax.experimental.pallas import tpu as pltpu


def _transpose_kernel(x_ref, o_ref):
    # x_ref: (C_tile, T_HW) tile in VMEM ; o_ref: (T_HW, C_tile) tile in VMEM.
    o_ref[...] = x_ref[...].T


# Keep at least this many total grid steps so the pipeline double-buffers
# (prefetch/writeback overlap) and v7x's two TensorCores both get work.
_MIN_GRID_STEPS = 4

_HW_TILE_CANDIDATES = (8192, 4096, 2048, 1024, 512, 256, 128)
_C_TILE_CANDIDATES = (2048, 1024, 512, 256, 128)


def _vmem_budget_and_limit():
    """Generation-aware (budget, vmem_limit_bytes) for the pipelined footprint.

    v5e/v6e (128 MiB physical VMEM): budget ~88 MiB, scoped limit 96 MiB.
    v7x     ( 64 MiB per TC)       : budget ~44 MiB, scoped limit 48 MiB.
    """
    cap = 64 * 1024 * 1024  # conservative default: v7x per-TC VMEM
    try:
        cap = int(pltpu.get_tpu_info().vmem_capacity_bytes)
    except Exception:
        pass
    cap = max(cap, 16 * 1024 * 1024)
    # ~3/4 of physical as scoped limit (headroom for Mosaic internal scratch),
    # ~11/16 of physical as the double-buffered in+out footprint budget.
    limit = min((cap * 3) // 4, 96 * 1024 * 1024)
    budget = min((cap * 11) // 16, limit)
    return budget, limit


def _select_tiling(B, C, HW, itemsize, budget):
    """Pick (t_hw, t_c); t_c == C means a 2D grid.  None -> XLA fallback."""

    def footprint(t_hw, t_c):
        # double-buffered (input tile + output tile)
        return 4 * t_c * t_hw * itemsize

    hw_cands = [t for t in _HW_TILE_CANDIDATES if HW % t == 0]
    if HW not in hw_cands:
        # A full-extent block is always layout-legal, even if HW % 128 != 0.
        hw_cands.append(HW)
    hw_cands.sort(reverse=True)

    # ---- full-C path (2D grid: (B, HW//t_hw)) -------------------------------
    fitting = [t for t in hw_cands if footprint(t, C) <= budget]
    if fitting:
        def n_steps(t):
            return B * (HW // t)

        # Prefer the largest tile that still gives >= _MIN_GRID_STEPS total
        # steps and an even step count (v7x 2-TC sharding); then relax.
        best = next(
            (t for t in fitting
             if n_steps(t) >= _MIN_GRID_STEPS and n_steps(t) % 2 == 0),
            None,
        )
        if best is None:
            best = next((t for t in fitting if n_steps(t) >= _MIN_GRID_STEPS), None)
        if best is None:
            best = fitting[0]
        return best, C

    # ---- C-tiled path (3D grid: (B, HW//t_hw, C//t_c)) ----------------------
    # Keep the output last dim a multiple of 128 (prefer the widest t_c that
    # fits so stores stay wide and unmasked).
    for t_c in (c for c in _C_TILE_CANDIDATES if C % c == 0):
        for t_hw in hw_cands:
            if footprint(t_hw, t_c) <= budget:
                return t_hw, t_c
    return None


def rearrange_b_c_h_w__to__b_hw_c(x, *, _vmem_budget_bytes=None):
    """Pallas equivalent of einops.rearrange(x, 'b c h w -> b (h w) c')."""
    B, C, H, W = x.shape
    HW = H * W
    x2 = x.reshape(B, C, HW)  # free reshape (row-major glue)
    itemsize = jnp.dtype(x.dtype).itemsize

    # Small / non-lane-aligned channel dim -> masked partial stores would
    # dominate; XLA's native transpose is strictly better there.
    if C < 128 or C % 128 != 0:
        return jnp.transpose(x2, (0, 2, 1))

    budget, vmem_limit = _vmem_budget_and_limit()
    if _vmem_budget_bytes is not None:  # test hook: force the C-tiled path
        budget = _vmem_budget_bytes

    tiling = _select_tiling(B, C, HW, itemsize, budget)
    if tiling is None:
        return jnp.transpose(x2, (0, 2, 1))
    t_hw, t_c = tiling

    if t_c == C:
        grid = (B, HW // t_hw)
        in_specs = [
            pl.BlockSpec((pl.Squeezed(), C, t_hw), lambda b, hw: (b, 0, hw))
        ]
        out_specs = pl.BlockSpec((pl.Squeezed(), t_hw, C), lambda b, hw: (b, hw, 0))
    else:
        grid = (B, HW // t_hw, C // t_c)
        in_specs = [
            pl.BlockSpec(
                (pl.Squeezed(), t_c, t_hw), lambda b, hw, c: (b, c, hw)
            )
        ]
        out_specs = pl.BlockSpec(
            (pl.Squeezed(), t_hw, t_c), lambda b, hw, c: (b, hw, c)
        )

    return pl.pallas_call(
        _transpose_kernel,
        out_shape=jax.ShapeDtypeStruct((B, HW, C), x.dtype),
        grid_spec=pltpu.PrefetchScalarGridSpec(
            num_scalar_prefetch=0,
            grid=grid,
            in_specs=in_specs,
            out_specs=out_specs,
        ),
        compiler_params=pltpu.CompilerParams(
            dimension_semantics=("parallel",) * len(grid),
            vmem_limit_bytes=vmem_limit,
        ),
        cost_estimate=pl.CostEstimate(
            flops=0,
            transcendentals=0,
            bytes_accessed=2 * B * C * HW * itemsize,
        ),
    )(x2)


class RearrangePallas:
    """Mirror of the PyTorch Rearrange module for 'b c h w -> b (h w) c'."""

    def __init__(self, pattern, **kwargs):
        assert pattern == "b c h w -> b (h w) c", (
            "Only the pattern used in hrsam_no_ssm.py is implemented."
        )
        self.pattern = pattern
        self.kwargs = kwargs

    def __call__(self, x):
        return rearrange_b_c_h_w__to__b_hw_c(x)


if __name__ == "__main__":
    key = jax.random.PRNGKey(0)
    k0, k1, k2 = jax.random.split(key, 3)
    mod = RearrangePallas("b c h w -> b (h w) c")

    # (1) Module-sized input (C=4): exercises the guarded small-C fast path.
    B, C, H, W = 2, 4, 16, 16
    x = jax.random.normal(k0, (B, C, H, W), dtype=jnp.float32)
    y = jax.block_until_ready(mod(x))
    ref = jnp.transpose(x.reshape(B, C, H * W), (0, 2, 1))
    assert y.shape == (B, H * W, C), y.shape
    assert y.dtype == x.dtype
    assert jnp.array_equal(y, ref), "mismatch vs reference (small-C fallback)"

    # (2) Pallas 2D-grid path: lane-aligned channels (C multiple of 128).
    B2, C2, H2, W2 = 2, 128, 16, 16
    x2 = jax.random.normal(k1, (B2, C2, H2, W2), dtype=jnp.float32)
    y2 = jax.block_until_ready(mod(x2))
    ref2 = jnp.transpose(x2.reshape(B2, C2, H2 * W2), (0, 2, 1))
    assert y2.shape == (B2, H2 * W2, C2), y2.shape
    assert jnp.array_equal(y2, ref2), "mismatch vs reference (Pallas 2D-grid path)"

    # (3) C-tiled 3D-grid path: force a tiny budget so full-C tiles don't fit.
    B3, C3, H3, W3 = 1, 256, 16, 16
    x3 = jax.random.normal(k2, (B3, C3, H3, W3), dtype=jnp.float32)
    y3 = jax.block_until_ready(
        rearrange_b_c_h_w__to__b_hw_c(x3, _vmem_budget_bytes=300 * 1024)
    )
    ref3 = jnp.transpose(x3.reshape(B3, C3, H3 * W3), (0, 2, 1))
    assert y3.shape == (B3, H3 * W3, C3), y3.shape
    assert jnp.array_equal(y3, ref3), "mismatch vs reference (Pallas C-tiled path)"

    print("KERNEL_OK")
</pallas_src>

<mosaic_0001>
module attributes {stable_mosaic.version = 11 : i64} {
  func.func @_transpose_kernel(%arg0: i32, %arg1: i32, %arg2: memref<1x128x128xf32, #tpu.memory_space<vmem>>, %arg3: memref<1x128x128xf32, #tpu.memory_space<vmem>>) attributes {dimension_semantics = [#tpu.dimension_semantics<parallel>, #tpu.dimension_semantics<parallel>], iteration_bounds = array<i64: 2, 2>, scalar_prefetch = 0 : i64, scratch_operands = 0 : i64, tpu.core_type = #tpu.core_type<tc>, window_params = [{transform_indices = @transform_0, window_bounds = array<i64: 1, 128, 128>}, {transform_indices = @transform_1, window_bounds = array<i64: 1, 128, 128>}]} {
    %c0 = arith.constant 0 : index
    %c0_0 = arith.constant 0 : index
    %c0_1 = arith.constant 0 : index
    %0 = vector.load %arg2[%c0, %c0_0, %c0_1] : memref<1x128x128xf32, #tpu.memory_space<vmem>>, vector<1x128x128xf32>
    %1 = vector.shape_cast %0 : vector<1x128x128xf32> to vector<128x128xf32>
    %2 = tpu.transpose %1, [1, 0] : vector<128x128xf32> -> vector<128x128xf32>
    %c0_2 = arith.constant 0 : index
    %c0_3 = arith.constant 0 : index
    %c0_4 = arith.constant 0 : index
    %3 = vector.load %arg3[%c0_2, %c0_3, %c0_4] : memref<1x128x128xf32, #tpu.memory_space<vmem>>, vector<1x128x128xf32>
    %4 = vector.shape_cast %3 : vector<1x128x128xf32> to vector<128x128xf32>
    %5 = vector.shape_cast %2 : vector<128x128xf32> to vector<1x128x128xf32>
    tpu.vector_store %arg3[%c0_2, %c0_3, %c0_4], %5 {strides = array<i32>} : memref<1x128x128xf32, #tpu.memory_space<vmem>>, vector<1x128x128xf32>,
    return
  }
  func.func @transform_0(%arg0: i32, %arg1: i32) -> (i32, i32, i32) {
    %c0_i32 = arith.constant 0 : i32
    %c0_i32_0 = arith.constant 0 : i32
    return %arg0, %c0_i32, %arg1 : i32, i32, i32
  }
  func.func @transform_1(%arg0: i32, %arg1: i32) -> (i32, i32, i32) {
    %c0_i32 = arith.constant 0 : i32
    %c0_i32_0 = arith.constant 0 : i32
    return %arg0, %arg1, %c0_i32 : i32, i32, i32
  }
}

</mosaic_0001>

<llo_original>
// kernel: tpu_custom_call.1
$region0: #{tpu_custom_call.1}
  #allocation0 [shape = 'u32[]', space=smem, size = 0x4, offset = 0x4, fixed_abs, tag = 'smem constant byte address 0x4 - core index']
  #allocation1 [shape = 'u32[144,128]{1,0:T(1,128)}', space=vmem, size = 0x12000, scoped, tag = 'internal scratch']
  %s0 = inlined_call_operand.hbm [shape: f32[2,128,256], index: 0, kind: input, shape index: {}]
  %s1 = inlined_call_operand.hbm [shape: f32[2,256,128], index: 1, kind: output, shape index: {}]
  %s2 = sld [smem:[#allocation0]]
  $region41: #{tpu_custom_call.1} parent=0
    _
  %s4 = ssub.s32 1, %s2
  %s5 = scalar_select 0, %s4, %s2
  $region1: #{tpu_custom_call.1} parent=0
    #allocation2 [shape = 'u8[131072]{0}', space=vmem, size = 0x20000, scoped, tag = 'input window, operand 0']
    #allocation3 [shape = 's32[2]{0}', space=sflag, size = 0x8, scoped, tag = 'scoped memory for tpu_custom_call.1']
    #allocation4 [shape = 's32[2]{0}', space=sflag, size = 0x8, scoped, tag = 'scoped memory for tpu_custom_call.1']
    #allocation5 [shape = 'u8[131072]{0}', space=vmem, size = 0x20000, scoped, tag = 'output window, operand 0']
    %6 = vsyncpa [#allocation3], 0
    %s7 = scalar_lea.sflag [#allocation3], 1
    %8 = vsyncpa %s7, 0
    %9 = vsyncpa [#allocation4], 0
    %s10 = scalar_lea.sflag [#allocation4], 1
    %11 = vsyncpa %s10, 0
    loop: start=0, step=1, limit=6
    $region2: #{tpu_custom_call.1} parent=1 // loop_pre_header
      _
    $region3: #{tpu_custom_call.1} parent=1 // loop_header
      %s13 = sphi 0, %s17
      %p14 = scmp.ge.s32.totalorder %s13, 6
      %s20 = sphi 0, %s32
      %s21 = sphi 0, %s28
      %s22 = sphi 0, %s20
      %s23 = sphi 0, %s21
      %s24 = sphi 0, %s22
      %s25 = sphi 0, %s23
      %s37 = sphi 0, %s39
      %s40 = sphi 0, %s37
      %s41 = sphi 0, %s40
      %s57 = sphi 0, %s41
      %s65 = sphi 0, %s67
      %s68 = sphi 0, %s65
      %s69 = sphi 0, %s68
      %s85 = sphi 0, %s69
    $region4: #{tpu_custom_call.1} parent=1 // loop_header_branch
      %16 = sbr.rel (%p14) target = $region8
    $region5: #{tpu_custom_call.1} parent=1 // loop_body
      %s18 = ssub.s32 %s13, 1
      %s19 = ssub.s32 %s13, 2
      %s26 = sadd.s32 1, %s21
      %p27 = scmp.ge.s32.totalorder %s26, 2
      %s28 = scalar_select %p27, 0, %s26
      %s29 = sadd.s32 1, %s20
      %s30 = scalar_select %p27, %s29, %s20
      %p31 = scmp.ge.s32.totalorder %s30, 2
      %s32 = scalar_select %p31, 0, %s30
      %s33 = ssub.s32 %s20, %s32
      %s34 = ssub.s32 %s21, %s28
      %s35 = sor.u32 %s33, %s34
      %p36 = scmp.eq.s32.totalorder %s35, 0
      %s38 = sadd.s32 %s37, 1
      %s39 = scalar_select %p36, %s37, %s38
      %p42 = pneg %p36
      %p43 = scmp.eq.s32.totalorder %s13, 3
      %p44 = por %p42, %p43
      %p45 = scmp.ne.s32.totalorder %s37, %s40
      %p46 = scmp.eq.s32.totalorder %s13, 0
      %p47 = por %p45, %p46
      %p48 = scmp.ne.s32.totalorder %s37, %s40
      %p49 = scmp.eq.s32.totalorder %s18, 3
      %p50 = por %p48, %p49
      %p51 = scmp.ne.s32.totalorder %s40, %s41
      %p52 = scmp.eq.s32.totalorder %s18, 0
      %p53 = por %p51, %p52
      %p54 = scmp.ne.s32.totalorder %s40, %s41
      %p55 = scmp.eq.s32.totalorder %s19, 3
      %p56 = por %p54, %p55
      %p58 = scmp.ne.s32.totalorder %s41, %s57
      %p59 = scmp.eq.s32.totalorder %s19, 0
      %p60 = por %p58, %p59
      %s61 = ssub.s32 %s20, %s32
      %s62 = ssub.s32 %s21, %s28
      %s63 = sor.u32 %s61, %s62
      %p64 = scmp.eq.s32.totalorder %s63, 0
      %s66 = sadd.s32 %s65, 1
      %s67 = scalar_select %p64, %s65, %s66
      %p70 = pneg %p64
      %p71 = scmp.eq.s32.totalorder %s13, 3
      %p72 = por %p70, %p71
      %p73 = scmp.ne.s32.totalorder %s65, %s68
      %p74 = scmp.eq.s32.totalorder %s13, 0
      %p75 = por %p73, %p74
      %p76 = scmp.ne.s32.totalorder %s65, %s68
      %p77 = scmp.eq.s32.totalorder %s18, 3
      %p78 = por %p76, %p77
      %p79 = scmp.ne.s32.totalorder %s68, %s69
      %p80 = scmp.eq.s32.totalorder %s18, 0
      %p81 = por %p79, %p80
      %p82 = scmp.ne.s32.totalorder %s68, %s69
      %p83 = scmp.eq.s32.totalorder %s19, 3
      %p84 = por %p82, %p83
      %p86 = scmp.ne.s32.totalorder %s69, %s85
      %p87 = scmp.eq.s32.totalorder %s19, 0
      %p88 = por %p86, %p87
      %p89 = scmp.le.s32.totalorder 1, %s13
      %p90 = scmp.lt.s32.totalorder %s13, 5
      %p91 = pnand %p89, %p90
      %p92 = pneg %p91
      // Predicated region
      $region9: #{tpu_custom_call.1} parent=5 // pred_check
        _
      $region10: #{tpu_custom_call.1} parent=5 // pred_check_branch
        %94 = sbr.rel (%p91) target = $region12
      $region11: #{tpu_custom_call.1} parent=5 // pred_region
        %s95 = ssub.s32 %s13, 1
      $region12: #{tpu_custom_call.1} parent=5 // pred_fallthru
        _
      %p96 = scmp.lt.s32.totalorder %s13, 4
      // Predicated region
      $region13: #{tpu_custom_call.1} parent=5 // pred_check
        %p97 = pneg %p96
      $region14: #{tpu_custom_call.1} parent=5 // pred_check_branch
        %99 = sbr.rel (%p97) target = $region16
      $region15: #{tpu_custom_call.1} parent=5 // pred_region
        // Predicated region
        $region17: #{tpu_custom_call.1} parent=15 // pred_check
          %p100 = pneg %p47
        $region18: #{tpu_custom_call.1} parent=15 // pred_check_branch
          %102 = sbr.rel (%p100) target = $region20
        $region19: #{tpu_custom_call.1} parent=15 // pred_region
          %s103 = sand.u32 %s37, 1
          %s104 = scalar_lea.sflag [#allocation3], %s103
          %s105 = sand.u32 %s37, 1
          %s106 = smul.addr %s105, 128
          %s107 = scalar_lea.vmem [#allocation2], %s106
          %s109 = ssub.s32 2048, 2048
          %110 = vsyncadd %s104, %s109
          %s111 = smul.addr %s20, 32
          %s112 = sadd.s32 %s21, %s111
          %s113 = smul.addr %s112, 128
          %s114 = scalar_lea.hbm %s0, %s113
          %s115 = sshll.u32 %s107, 4
          %s116 = int_to_ptr.vmem [resolvable:$true] %s115
          %121 = dma.hbm_to_vmem [thread:$0]  %s114, 2048, %s116, %s104, 256, 128, 8
        $region20: #{tpu_custom_call.1} parent=15 // pred_fallthru
          _
      $region16: #{tpu_custom_call.1} parent=5 // pred_fallthru
        _
      %p122 = scmp.le.s32.totalorder 1, %s13
      %p123 = scmp.lt.s32.totalorder %s13, 5
      %p124 = pnand %p122, %p123
      %p125 = pneg %p124
      // Predicated region
      $region21: #{tpu_custom_call.1} parent=5 // pred_check
        _
      $region22: #{tpu_custom_call.1} parent=5 // pred_check_branch
        %127 = sbr.rel (%p124) target = $region24
      $region23: #{tpu_custom_call.1} parent=5 // pred_region
        %s128 = ssub.s32 %s13, 1
        %s129 = sand.u32 %s40, 1
        %s130 = scalar_lea.sflag [#allocation3], %s129
        %s131 = sand.u32 %s40, 1
        %s132 = smul.addr %s131, 128
        %s133 = scalar_lea.vmem [#allocation2], %s132
        // Predicated region
        $region25: #{tpu_custom_call.1} parent=23 // pred_check
          %p134 = pneg %p53
        $region26: #{tpu_custom_call.1} parent=23 // pred_check_branch
          %136 = sbr.rel (%p134) target = $region28
        $region27: #{tpu_custom_call.1} parent=23 // pred_region
          %137 = dma.done %s130, 2048
        $region28: #{tpu_custom_call.1} parent=23 // pred_fallthru
          _
        %s138 = sand.u32 %s40, 1
        %s139 = scalar_lea.sflag [#allocation3], %s138
        %s140 = sand.u32 %s40, 1
        %s141 = smul.addr %s140, 128
        %s142 = scalar_lea.vmem [#allocation2], %s141
        %p143 = pneg %p53
        %p144 = pneg %p50
        %p145 = pneg %p81
        %p146 = pneg %p78
        %s147 = sand.u32 %s68, 1
        %s148 = scalar_lea.sflag [#allocation4], %s147
        %s149 = sand.u32 %s68, 1
        %s150 = smul.addr %s149, 128
        %s151 = scalar_lea.vmem [#allocation5], %s150
        %s152 = smul.u32 16, %s23
        %v153 = vld [vmem:[%s133] sm:$0xff]
        %v154 = vld [vmem:[%s133 + $0x8] sm:$0xff]
        %v155 = vld [vmem:[%s133 + $0x10] sm:$0xff]
        %v156 = vld [vmem:[%s133 + $0x18] sm:$0xff]
        %v157 = vld [vmem:[%s133 + $0x20] sm:$0xff]
        %v158 = vld [vmem:[%s133 + $0x28] sm:$0xff]
        %v159 = vld [vmem:[%s133 + $0x30] sm:$0xff]
        %v160 = vld [vmem:[%s133 + $0x38] sm:$0xff]
        %v161 = vld [vmem:[%s133 + $0x40] sm:$0xff]
        %v162 = vld [vmem:[%s133 + $0x48] sm:$0xff]
        %v163 = vld [vmem:[%s133 + $0x50] sm:$0xff]
        %v164 = vld [vmem:[%s133 + $0x58] sm:$0xff]
        %v165 = vld [vmem:[%s133 + $0x60] sm:$0xff]
        %v166 = vld [vmem:[%s133 + $0x68] sm:$0xff]
        %v167 = vld [vmem:[%s133 + $0x70] sm:$0xff]
        %v168 = vld [vmem:[%s133 + $0x78] sm:$0xff]
        %169 = vxpose.xlu0.b32.start [1/16] %v153, 128
        %170 = vxpose.xlu0.b32.cont [2/16] %v154, 128
        %171 = vxpose.xlu0.b32.cont [3/16] %v155, 128
        %172 = vxpose.xlu0.b32.cont [4/16] %v156, 128
        %173 = vxpose.xlu0.b32.cont [5/16] %v157, 128
        %174 = vxpose.xlu0.b32.cont [6/16] %v158, 128
        %175 = vxpose.xlu0.b32.cont [7/16] %v159, 128
        %176 = vxpose.xlu0.b32.cont [8/16] %v160, 128
        %177 = vxpose.xlu0.b32.cont [9/16] %v161, 128
        %178 = vxpose.xlu0.b32.cont [10/16] %v162, 128
        %179 = vxpose.xlu0.b32.cont [11/16] %v163, 128
        %180 = vxpose.xlu0.b32.cont [12/16] %v164, 128
        %181 = vxpose.xlu0.b32.cont [13/16] %v165, 128
        %182 = vxpose.xlu0.b32.cont [14/16] %v166, 128
        %183 = vxpose.xlu0.b32.cont [15/16] %v167, 128
        %184 = vxpose.xlu0.b32.end [16/16] %v168, 128
        %v185 = vpop.trf.xlu0
        %v186 = vpop.trf.xlu0
        %v187 = vpop.trf.xlu0
        %v188 = vpop.trf.xlu0
        %v189 = vpop.trf.xlu0
        %v190 = vpop.trf.xlu0
        %v191 = vpop.trf.xlu0
        %v192 = vpop.trf.xlu0
        %v193 = vpop.trf.xlu0
        %v194 = vpop.trf.xlu0
        %v195 = vpop.trf.xlu0
        %v196 = vpop.trf.xlu0
        %v197 = vpop.trf.xlu0
        %v198 = vpop.trf.xlu0
        %v199 = vpop.trf.xlu0
        %v200 = vpop.trf.xlu0
        %201 = vst [vmem:[%s151] sm:$0xff] %v185
        %202 = vst [vmem:[%s151 + $0x8] sm:$0xff] %v186
        %203 = vst [vmem:[%s151 + $0x10] sm:$0xff] %v187
        %204 = vst [vmem:[%s151 + $0x18] sm:$0xff] %v188
        %205 = vst [vmem:[%s151 + $0x20] sm:$0xff] %v189
        %206 = vst [vmem:[%s151 + $0x28] sm:$0xff] %v190
        %207 = vst [vmem:[%s151 + $0x30] sm:$0xff] %v191
        %208 = vst [vmem:[%s151 + $0x38] sm:$0xff] %v192
        %209 = vst [vmem:[%s151 + $0x40] sm:$0xff] %v193
        %210 = vst [vmem:[%s151 + $0x48] sm:$0xff] %v194
        %211 = vst [vmem:[%s151 + $0x50] sm:$0xff] %v195
        %212 = vst [vmem:[%s151 + $0x58] sm:$0xff] %v196
        %213 = vst [vmem:[%s151 + $0x60] sm:$0xff] %v197
        %214 = vst [vmem:[%s151 + $0x68] sm:$0xff] %v198
        %215 = vst [vmem:[%s151 + $0x70] sm:$0xff] %v199
        %216 = vst [vmem:[%s151 + $0x78] sm:$0xff] %v200
        %s217 = sand.u32 %s68, 1
        %s218 = scalar_lea.sflag [#allocation4], %s217
        %s219 = sand.u32 %s68, 1
        %s220 = smul.addr %s219, 128
        %s221 = scalar_lea.vmem [#allocation5], %s220
        // Predicated region
        $region29: #{tpu_custom_call.1} parent=23 // pred_check
          %p222 = pneg %p78
        $region30: #{tpu_custom_call.1} parent=23 // pred_check_branch
          %224 = sbr.rel (%p222) target = $region32
        $region31: #{tpu_custom_call.1} parent=23 // pred_region
          %s225 = smul.u32 16, %s23
          %s227 = ssub.s32 2048, 2048
          %228 = vsyncadd %s218, %s227
          %s229 = smul.addr %s22, 32
          %s230 = sadd.s32 %s225, %s229
          %s231 = smul.addr %s230, 128
          %s232 = scalar_lea.hbm %s1, %s231
          %s233 = sshll.u32 %s221, 4
          %s234 = int_to_ptr.vmem [resolvable:$true] %s233
          %239 = dma.vmem_to_hbm [thread:$0]  %s234, 2048, %s232, %s218, 128, 128, 8
        $region32: #{tpu_custom_call.1} parent=23 // pred_fallthru
          _
      $region24: #{tpu_custom_call.1} parent=5 // pred_fallthru
        _
      %p240 = scmp.le.s32.totalorder 2, %s13
      // Predicated region
      $region33: #{tpu_custom_call.1} parent=5 // pred_check
        %p241 = pneg %p240
      $region34: #{tpu_custom_call.1} parent=5 // pred_check_branch
        %243 = sbr.rel (%p241) target = $region36
      $region35: #{tpu_custom_call.1} parent=5 // pred_region
        %s244 = ssub.s32 %s13, 2
        // Predicated region
        $region37: #{tpu_custom_call.1} parent=35 // pred_check
          %p245 = pneg %p84
        $region38: #{tpu_custom_call.1} parent=35 // pred_check_branch
          %247 = sbr.rel (%p245) target = $region40
        $region39: #{tpu_custom_call.1} parent=35 // pred_region
          %s248 = sand.u32 %s69, 1
          %s249 = scalar_lea.sflag [#allocation4], %s248
          %s250 = sand.u32 %s69, 1
          %s251 = smul.addr %s250, 128
          %s252 = scalar_lea.vmem [#allocation5], %s251
          %253 = dma.done %s249, 2048
        $region40: #{tpu_custom_call.1} parent=35 // pred_fallthru
          _
      $region36: #{tpu_custom_call.1} parent=5 // pred_fallthru
        _
    $region6: #{tpu_custom_call.1} parent=1 // loop_footer
      %s17 = sadd.s32 1, %s13
    $region7: #{tpu_custom_call.1} parent=1 // loop_footer_branch
      %12 = sbr.rel target = $region3
    $region8: #{tpu_custom_call.1} parent=1 // loop_exit
      _
    %254 = vsyncpa [#allocation3], 1
    %s255 = scalar_lea.sflag [#allocation3], 1
    %256 = vsyncpa %s255, 1
    %257 = vsyncpa [#allocation4], 1
    %s258 = scalar_lea.sflag [#allocation4], 1
    %259 = vsyncpa %s258, 1

</llo_original>
